<compile_context>
chip_gen: v7x
topology: tpu7x:2x2x1
jax: 0.10.0
libtpu: 0.0.40
codegen_flags: <defaults>
</compile_context>

<pallas_src>
import functools

import jax
import jax.numpy as jnp
from jax.experimental import pallas as pl
from jax.experimental.pallas import tpu as pltpu

_BN_EPS = 1e-5
_LANE = 128


def _round_up(n, m):
    return ((n + m - 1) // m) * m


def _vmem_spec():
    # Whole (small, padded) array resident in VMEM; block == full array.
    return pl.BlockSpec(memory_space=pltpu.VMEM)


def _make_fused_kernel(n_layers, bn_eps, compute_dtype):
    """Fused kernel over stacked params.

    Refs: x (B, Dp) compute_dtype
          w_ref (n_layers, Dp, Dp) compute_dtype  (zero-padded weights)
          vec_ref (n_layers, 2, Dp) f32:
             hidden layer i : row 0 = gamma, row 1 = beta (zero-padded)
             last layer     : row 0 = bias,  row 1 = unused zeros
          o_ref (B, Dp) f32
    Pre-BN linear biases are omitted: BN's mean subtraction cancels them.
    """

    def kernel(x_ref, w_ref, vec_ref, o_ref):
        h = x_ref[...].astype(compute_dtype)
        for i in range(n_layers - 1):
            # MXU matmul with f32 accumulation.
            y = jnp.dot(h, w_ref[i], preferred_element_type=jnp.float32)
            # Single-pass batch stats: E[y^2] - E[y]^2 (two independent
            # reductions; clamp tiny negative rounding residue).
            mean = jnp.mean(y, axis=0, keepdims=True)
            mean_sq = jnp.mean(y * y, axis=0, keepdims=True)
            var = jnp.maximum(mean_sq - mean * mean, 0.0)
            gamma = vec_ref[i, 0:1, :]
            beta = vec_ref[i, 1:2, :]
            # BN folded into one scale/shift per feature, then ReLU.
            # Padded columns: var==0 -> rsqrt(eps) large, but gamma==0 there,
            # so scale==0 and the padded lanes stay exactly zero.
            scale = gamma * jax.lax.rsqrt(var + bn_eps)
            shift = beta - mean * scale
            h = jnp.maximum(y * scale + shift, 0.0).astype(compute_dtype)
        y = jnp.dot(h, w_ref[n_layers - 1], preferred_element_type=jnp.float32)
        o_ref[...] = (y + vec_ref[n_layers - 1, 0:1, :]).astype(o_ref.dtype)

    return kernel


def prepare_params(params, use_bf16_mxu=False):
    """One-time (host/init-time) padding, casting and stacking of parameters.

    Returns dict with:
      w_stack   (n_layers, Dp, Dp)  compute dtype, zero-padded weights
      vec_stack (n_layers, 2, Dp)   f32: [gamma, beta] per hidden layer,
                                    [bias, 0] for the last layer
      out_dim   true output feature count (for slicing)
    """
    n_layers = len(params)
    dims = [params[0]["w"].shape[0]] + [l["w"].shape[1] for l in params]
    dp = max(_round_up(d, _LANE) for d in dims)
    w_dtype = jnp.bfloat16 if use_bf16_mxu else jnp.float32

    w_stack = jnp.zeros((n_layers, dp, dp), w_dtype)
    vec_stack = jnp.zeros((n_layers, 2, dp), jnp.float32)
    for i, layer in enumerate(params):
        din, dout = layer["w"].shape
        w_stack = w_stack.at[i, :din, :dout].set(layer["w"].astype(w_dtype))
        if i < n_layers - 1:
            # gamma/beta zero-padded -> padded features stay exactly 0.
            vec_stack = vec_stack.at[i, 0, :dout].set(layer["gamma"][0])
            vec_stack = vec_stack.at[i, 1, :dout].set(layer["beta"][0])
        else:
            vec_stack = vec_stack.at[i, 0, :dout].set(layer["b"][0])
    return {
        "w_stack": w_stack,
        "vec_stack": vec_stack,
        "out_dim": dims[-1],
        "padded_dim": dp,
    }


@functools.partial(jax.jit, static_argnames=("out_dim", "use_bf16_mxu"))
def linear_network_forward(x, w_stack, vec_stack, *, out_dim,
                           use_bf16_mxu=False):
    """x: (B, in_dim) f32; w_stack/vec_stack: from prepare_params."""
    n_layers, dp, _ = w_stack.shape
    batch, d_in = x.shape
    compute_dtype = jnp.bfloat16 if use_bf16_mxu else jnp.float32

    # Only the dynamic activation is padded per call; params are pre-padded.
    xp = jnp.pad(x, ((0, 0), (0, dp - d_in))).astype(compute_dtype)

    kernel = _make_fused_kernel(n_layers, _BN_EPS, compute_dtype)
    out_p = pl.pallas_call(
        kernel,
        out_shape=jax.ShapeDtypeStruct((batch, dp), jnp.float32),
        in_specs=[_vmem_spec(), _vmem_spec(), _vmem_spec()],
        out_specs=_vmem_spec(),
    )(xp, w_stack, vec_stack)
    # Slice padded feature columns off before any downstream consumer.
    return out_p[:, :out_dim]
    # TODO(synk): for large batch, tile the batch axis with a "parallel" grid
    # (megacore on v7x, tile sized for 64 MiB VMEM) and compute BN stats with
    # a cross-tile accumulator / two-sweep grid so stats stay global-batch.


def init_params(key, layer_params):
    """nn.Linear U(-1/sqrt(fan_in)) init; BatchNorm1d gamma=1, beta=0."""
    params = []
    for i, llp in enumerate(layer_params):
        din, dout = llp["in_dim"], llp["out_dim"]
        key, kw, kb = jax.random.split(key, 3)
        bound = 1.0 / jnp.sqrt(jnp.float32(din))
        w = jax.random.uniform(kw, (din, dout), jnp.float32, -bound, bound)
        b = jax.random.uniform(kb, (1, dout), jnp.float32, -bound, bound)
        layer = {"w": w, "b": b}
        if i < len(layer_params) - 1:
            layer["gamma"] = jnp.ones((1, dout), jnp.float32)
            layer["beta"] = jnp.zeros((1, dout), jnp.float32)
        params.append(layer)
    return params


if __name__ == "__main__":
    # Small config: 3 linear layers; BN + ReLU between them (not after last).
    layer_params = [
        {"in_dim": 32, "out_dim": 64},
        {"in_dim": 64, "out_dim": 48},
        {"in_dim": 48, "out_dim": 16},
    ]
    batch = 8  # multiple of the f32 sublane tile (8)

    key = jax.random.PRNGKey(0)
    key, kx = jax.random.split(key)
    x = jax.random.normal(kx, (batch, layer_params[0]["in_dim"]), jnp.float32)
    params = init_params(key, layer_params)

    # Pure-JAX f32 reference of the PyTorch forward (includes linear biases;
    # BN mean-subtraction makes them irrelevant pre-BN, identical math).
    ref = x
    for i, layer in enumerate(params):
        ref = ref @ layer["w"] + layer["b"]
        if i < len(params) - 1:
            m = jnp.mean(ref, axis=0, keepdims=True)
            v = jnp.mean((ref - m) ** 2, axis=0, keepdims=True)
            ref = layer["gamma"] * (ref - m) / jnp.sqrt(v + _BN_EPS) + layer["beta"]
            ref = jnp.maximum(ref, 0.0)

    out_dim = layer_params[-1]["out_dim"]

    # Default path: f32 MXU feed (best at tiny batch), tight match.
    prep_f32 = prepare_params(params, use_bf16_mxu=False)
    out_f32 = linear_network_forward(
        x, prep_f32["w_stack"], prep_f32["vec_stack"],
        out_dim=out_dim, use_bf16_mxu=False)
    jax.block_until_ready(out_f32)
    assert out_f32.shape == (batch, out_dim)
    assert jnp.allclose(out_f32, ref, atol=1e-3, rtol=1e-3)

    # Optional bf16-feed path for large-batch throughput (f32 accumulation,
    # BN math in f32; bf16 inter-layer activations -> loose tolerance).
    prep_bf16 = prepare_params(params, use_bf16_mxu=True)
    out_bf16 = linear_network_forward(
        x, prep_bf16["w_stack"], prep_bf16["vec_stack"],
        out_dim=out_dim, use_bf16_mxu=True)
    jax.block_until_ready(out_bf16)
    assert out_bf16.shape == (batch, out_dim)
    assert jnp.allclose(out_bf16, ref, atol=5e-2, rtol=5e-2)

    print("KERNEL_OK")
</pallas_src>

<mosaic_0001>
module attributes {stable_mosaic.version = 11 : i64} {
  func.func @kernel(%arg0: memref<8x128xf32, #tpu.memory_space<vmem>>, %arg1: memref<3x128x128xf32, #tpu.memory_space<vmem>>, %arg2: memref<3x2x128xf32, #tpu.memory_space<vmem>>, %arg3: memref<8x128xf32, #tpu.memory_space<vmem>>) attributes {dimension_semantics = [], scalar_prefetch = 0 : i64, scratch_operands = 0 : i64, tpu.core_type = #tpu.core_type<tc>} {
    %c0 = arith.constant 0 : index
    %c0_0 = arith.constant 0 : index
    %0 = vector.load %arg0[%c0, %c0_0] : memref<8x128xf32, #tpu.memory_space<vmem>>, vector<8x128xf32>
    %c0_1 = arith.constant 0 : index
    %c0_2 = arith.constant 0 : index
    %c0_3 = arith.constant 0 : index
    %1 = vector.load %arg1[%c0_1, %c0_2, %c0_3] : memref<3x128x128xf32, #tpu.memory_space<vmem>>, vector<1x128x128xf32>
    %2 = vector.shape_cast %1 : vector<1x128x128xf32> to vector<128x128xf32>
    %cst = arith.constant dense<0.000000e+00> : vector<8x128xf32>
    %3 = tpu.matmul %0, %2, %cst {dimension_numbers = #tpu.dot_dimension_numbers<[1], [0], [0], [1], [0, 0, 1, 1], [], []>} : vector<8x128xf32>, vector<128x128xf32>, vector<8x128xf32> -> vector<8x128xf32>
    %cst_4 = arith.constant dense<0.000000e+00> : vector<128xf32>
    %4 = vector.multi_reduction <add>, %3, %cst_4 [0] : vector<8x128xf32> to vector<128xf32>
    %5 = vector.shape_cast %4 : vector<128xf32> to vector<1x128xf32>
    %cst_5 = arith.constant 8.000000e+00 : f32
    %6 = vector.broadcast %cst_5 : f32 to vector<1x128xf32>
    %7 = arith.divf %5, %6 : vector<1x128xf32>
    %8 = arith.mulf %3, %3 : vector<8x128xf32>
    %cst_6 = arith.constant dense<0.000000e+00> : vector<128xf32>
    %9 = vector.multi_reduction <add>, %8, %cst_6 [0] : vector<8x128xf32> to vector<128xf32>
    %10 = vector.shape_cast %9 : vector<128xf32> to vector<1x128xf32>
    %cst_7 = arith.constant 8.000000e+00 : f32
    %11 = vector.broadcast %cst_7 : f32 to vector<1x128xf32>
    %12 = arith.divf %10, %11 : vector<1x128xf32>
    %13 = arith.mulf %7, %7 : vector<1x128xf32>
    %14 = arith.subf %12, %13 : vector<1x128xf32>
    %cst_8 = arith.constant 0.000000e+00 : f32
    %15 = vector.broadcast %cst_8 : f32 to vector<1x128xf32>
    %16 = arith.maximumf %14, %15 : vector<1x128xf32>
    %c0_9 = arith.constant 0 : index
    %c0_10 = arith.constant 0 : index
    %c0_11 = arith.constant 0 : index
    %17 = vector.load %arg2[%c0_9, %c0_10, %c0_11] : memref<3x2x128xf32, #tpu.memory_space<vmem>>, vector<1x1x128xf32>
    %18 = vector.shape_cast %17 : vector<1x1x128xf32> to vector<1x128xf32>
    %c0_12 = arith.constant 0 : index
    %c1 = arith.constant 1 : index
    %c0_13 = arith.constant 0 : index
    %19 = vector.load %arg2[%c0_12, %c1, %c0_13] : memref<3x2x128xf32, #tpu.memory_space<vmem>>, vector<1x1x128xf32>
    %20 = vector.shape_cast %19 : vector<1x1x128xf32> to vector<1x128xf32>
    %cst_14 = arith.constant 9.99999974E-6 : f32
    %21 = vector.broadcast %cst_14 : f32 to vector<1x128xf32>
    %22 = arith.addf %16, %21 : vector<1x128xf32>
    %23 = math.rsqrt %22 : vector<1x128xf32>
    %24 = arith.mulf %18, %23 : vector<1x128xf32>
    %25 = arith.mulf %7, %24 : vector<1x128xf32>
    %26 = arith.subf %20, %25 : vector<1x128xf32>
    %27 = vector.broadcast %24 : vector<1x128xf32> to vector<8x128xf32>
    %28 = arith.mulf %3, %27 : vector<8x128xf32>
    %29 = vector.broadcast %26 : vector<1x128xf32> to vector<8x128xf32>
    %30 = arith.addf %28, %29 : vector<8x128xf32>
    %cst_15 = arith.constant 0.000000e+00 : f32
    %31 = vector.broadcast %cst_15 : f32 to vector<8x128xf32>
    %32 = arith.maximumf %30, %31 : vector<8x128xf32>
    %c1_16 = arith.constant 1 : index
    %c0_17 = arith.constant 0 : index
    %c0_18 = arith.constant 0 : index
    %33 = vector.load %arg1[%c1_16, %c0_17, %c0_18] : memref<3x128x128xf32, #tpu.memory_space<vmem>>, vector<1x128x128xf32>
    %34 = vector.shape_cast %33 : vector<1x128x128xf32> to vector<128x128xf32>
    %cst_19 = arith.constant dense<0.000000e+00> : vector<8x128xf32>
    %35 = tpu.matmul %32, %34, %cst_19 {dimension_numbers = #tpu.dot_dimension_numbers<[1], [0], [0], [1], [0, 0, 1, 1], [], []>} : vector<8x128xf32>, vector<128x128xf32>, vector<8x128xf32> -> vector<8x128xf32>
    %cst_20 = arith.constant dense<0.000000e+00> : vector<128xf32>
    %36 = vector.multi_reduction <add>, %35, %cst_20 [0] : vector<8x128xf32> to vector<128xf32>
    %37 = vector.shape_cast %36 : vector<128xf32> to vector<1x128xf32>
    %cst_21 = arith.constant 8.000000e+00 : f32
    %38 = vector.broadcast %cst_21 : f32 to vector<1x128xf32>
    %39 = arith.divf %37, %38 : vector<1x128xf32>
    %40 = arith.mulf %35, %35 : vector<8x128xf32>
    %cst_22 = arith.constant dense<0.000000e+00> : vector<128xf32>
    %41 = vector.multi_reduction <add>, %40, %cst_22 [0] : vector<8x128xf32> to vector<128xf32>
    %42 = vector.shape_cast %41 : vector<128xf32> to vector<1x128xf32>
    %cst_23 = arith.constant 8.000000e+00 : f32
    %43 = vector.broadcast %cst_23 : f32 to vector<1x128xf32>
    %44 = arith.divf %42, %43 : vector<1x128xf32>
    %45 = arith.mulf %39, %39 : vector<1x128xf32>
    %46 = arith.subf %44, %45 : vector<1x128xf32>
    %cst_24 = arith.constant 0.000000e+00 : f32
    %47 = vector.broadcast %cst_24 : f32 to vector<1x128xf32>
    %48 = arith.maximumf %46, %47 : vector<1x128xf32>
    %c1_25 = arith.constant 1 : index
    %c0_26 = arith.constant 0 : index
    %c0_27 = arith.constant 0 : index
    %49 = vector.load %arg2[%c1_25, %c0_26, %c0_27] : memref<3x2x128xf32, #tpu.memory_space<vmem>>, vector<1x1x128xf32>
    %50 = vector.shape_cast %49 : vector<1x1x128xf32> to vector<1x128xf32>
    %c1_28 = arith.constant 1 : index
    %c1_29 = arith.constant 1 : index
    %c0_30 = arith.constant 0 : index
    %51 = vector.load %arg2[%c1_28, %c1_29, %c0_30] : memref<3x2x128xf32, #tpu.memory_space<vmem>>, vector<1x1x128xf32>
    %52 = vector.shape_cast %51 : vector<1x1x128xf32> to vector<1x128xf32>
    %cst_31 = arith.constant 9.99999974E-6 : f32
    %53 = vector.broadcast %cst_31 : f32 to vector<1x128xf32>
    %54 = arith.addf %48, %53 : vector<1x128xf32>
    %55 = math.rsqrt %54 : vector<1x128xf32>
    %56 = arith.mulf %50, %55 : vector<1x128xf32>
    %57 = arith.mulf %39, %56 : vector<1x128xf32>
    %58 = arith.subf %52, %57 : vector<1x128xf32>
    %59 = vector.broadcast %56 : vector<1x128xf32> to vector<8x128xf32>
    %60 = arith.mulf %35, %59 : vector<8x128xf32>
    %61 = vector.broadcast %58 : vector<1x128xf32> to vector<8x128xf32>
    %62 = arith.addf %60, %61 : vector<8x128xf32>
    %cst_32 = arith.constant 0.000000e+00 : f32
    %63 = vector.broadcast %cst_32 : f32 to vector<8x128xf32>
    %64 = arith.maximumf %62, %63 : vector<8x128xf32>
    %c2 = arith.constant 2 : index
    %c0_33 = arith.constant 0 : index
    %c0_34 = arith.constant 0 : index
    %65 = vector.load %arg1[%c2, %c0_33, %c0_34] : memref<3x128x128xf32, #tpu.memory_space<vmem>>, vector<1x128x128xf32>
    %66 = vector.shape_cast %65 : vector<1x128x128xf32> to vector<128x128xf32>
    %cst_35 = arith.constant dense<0.000000e+00> : vector<8x128xf32>
    %67 = tpu.matmul %64, %66, %cst_35 {dimension_numbers = #tpu.dot_dimension_numbers<[1], [0], [0], [1], [0, 0, 1, 1], [], []>} : vector<8x128xf32>, vector<128x128xf32>, vector<8x128xf32> -> vector<8x128xf32>
    %c2_36 = arith.constant 2 : index
    %c0_37 = arith.constant 0 : index
    %c0_38 = arith.constant 0 : index
    %68 = vector.load %arg2[%c2_36, %c0_37, %c0_38] : memref<3x2x128xf32, #tpu.memory_space<vmem>>, vector<1x1x128xf32>
    %69 = vector.shape_cast %68 : vector<1x1x128xf32> to vector<1x128xf32>
    %70 = vector.broadcast %69 : vector<1x128xf32> to vector<8x128xf32>
    %71 = arith.addf %67, %70 : vector<8x128xf32>
    %c0_39 = arith.constant 0 : index
    %c0_40 = arith.constant 0 : index
    %72 = vector.load %arg3[%c0_39, %c0_40] : memref<8x128xf32, #tpu.memory_space<vmem>>, vector<8x128xf32>
    tpu.vector_store %arg3[%c0_39, %c0_40], %71 {strides = array<i32>} : memref<8x128xf32, #tpu.memory_space<vmem>>, vector<8x128xf32>,
    return
  }
}

</mosaic_0001>

<llo_original>
// kernel: linear_network_forward.1
$region0: #{linear_network_forward.1}
  #allocation0 [shape = 'u32[]', space=smem, size = 0x4, offset = 0x4, fixed_abs, tag = 'smem constant byte address 0x4 - core index']
  #allocation1 [shape = 'u32[144,128]{1,0:T(1,128)}', space=vmem, size = 0x12000, scoped, tag = 'internal scratch']
  %s0 = inlined_call_operand.vmem [shape: f32[8,128], index: 0, kind: input, shape index: {}]
  %s1 = inlined_call_operand.hbm [shape: f32[3,128,128], index: 1, kind: input, shape index: {}]
  %s2 = inlined_call_operand.vmem [shape: f32[3,2,128], index: 2, kind: input, shape index: {}]
  %s3 = inlined_call_operand.hbm [shape: f32[8,128], index: 3, kind: output, shape index: {}]
  %s4 = sld [smem:[#allocation0]]
  $region26: #{linear_network_forward.1} parent=0
    _
  %s6 = ssub.s32 1, %s4
  %s7 = scalar_select 0, %s6, %s4
  $region1: #{linear_network_forward.1} parent=0
    #allocation2 [shape = 'u8[196608]{0}', space=vmem, size = 0x30000, scoped, tag = 'input window, operand 1, single buffered']
    #allocation3 [shape = 's32[1]{0}', space=sflag, size = 0x4, scoped, tag = 'scoped memory for linear_network_forward.1']
    #allocation4 [shape = 's32[1]{0}', space=sflag, size = 0x4, scoped, tag = 'scoped memory for linear_network_forward.1']
    #allocation5 [shape = 'u8[4096]{0}', space=vmem, size = 0x1000, scoped, tag = 'output window, operand 0, single buffered']
    %8 = vsyncpa [#allocation3], 0
    %9 = vsyncpa [#allocation4], 0
    // Predicated region
    $region2: #{linear_network_forward.1} parent=1 // pred_check
      _
    $region3: #{linear_network_forward.1} parent=1 // pred_check_branch
      %11 = sbr.rel (0) target = $region5
    $region4: #{linear_network_forward.1} parent=1 // pred_region
      _
    $region5: #{linear_network_forward.1} parent=1 // pred_fallthru
      _
    // Predicated region
    $region6: #{linear_network_forward.1} parent=1 // pred_check
      _
    $region7: #{linear_network_forward.1} parent=1 // pred_check_branch
      %13 = sbr.rel (0) target = $region9
    $region8: #{linear_network_forward.1} parent=1 // pred_region
      %s15 = ssub.s32 6144, 6144
      %16 = vsyncadd [#allocation3], %s15
      %s17 = sshll.u32 [#allocation2], 4
      %s18 = int_to_ptr.vmem [resolvable:$true] %s17
      %23 = dma.hbm_to_vmem [thread:$0]  %s1, 6144, %s18, [#allocation3], 128, 128, 8
    $region9: #{linear_network_forward.1} parent=1 // pred_fallthru
      _
    // Predicated region
    $region10: #{linear_network_forward.1} parent=1 // pred_check
      _
    $region11: #{linear_network_forward.1} parent=1 // pred_check_branch
      %25 = sbr.rel (0) target = $region13
    $region12: #{linear_network_forward.1} parent=1 // pred_region
      _
    $region13: #{linear_network_forward.1} parent=1 // pred_fallthru
      _
    // Predicated region
    $region14: #{linear_network_forward.1} parent=1 // pred_check
      _
    $region15: #{linear_network_forward.1} parent=1 // pred_check_branch
      %27 = sbr.rel (0) target = $region17
    $region16: #{linear_network_forward.1} parent=1 // pred_region
      %28 = dma.done [#allocation3], 6144
    $region17: #{linear_network_forward.1} parent=1 // pred_fallthru
      _
    %v29 = vld [vmem:[%s0] sm:$0xff]
    %v30 = vld [vmem:[#allocation2] sm:$0xff]
    %v31 = vld [vmem:[#allocation2 + $0x8] sm:$0xff]
    %v32 = vld [vmem:[#allocation2 + $0x10] sm:$0xff]
    %v33 = vld [vmem:[#allocation2 + $0x18] sm:$0xff]
    %v34 = vld [vmem:[#allocation2 + $0x20] sm:$0xff]
    %v35 = vld [vmem:[#allocation2 + $0x28] sm:$0xff]
    %v36 = vld [vmem:[#allocation2 + $0x30] sm:$0xff]
    %v37 = vld [vmem:[#allocation2 + $0x38] sm:$0xff]
    %v38 = vld [vmem:[#allocation2 + $0x40] sm:$0xff]
    %v39 = vld [vmem:[#allocation2 + $0x48] sm:$0xff]
    %v40 = vld [vmem:[#allocation2 + $0x50] sm:$0xff]
    %v41 = vld [vmem:[#allocation2 + $0x58] sm:$0xff]
    %v42 = vld [vmem:[#allocation2 + $0x60] sm:$0xff]
    %v43 = vld [vmem:[#allocation2 + $0x68] sm:$0xff]
    %v44 = vld [vmem:[#allocation2 + $0x70] sm:$0xff]
    %v45 = vld [vmem:[#allocation2 + $0x78] sm:$0xff]
    %46 = vmatprep.subr.mxu0 0.0
    %47 = vmatpush1.msra.mxu0 %v30
    %48 = vmatprep.subr.mxu0 0.0
    %49 = vmatpush1.msra.mxu0 %v31
    %50 = vmatprep.subr.mxu0 0.0
    %51 = vmatpush1.msra.mxu0 %v32
    %52 = vmatprep.subr.mxu0 0.0
    %53 = vmatpush1.msra.mxu0 %v33
    %54 = vmatprep.subr.mxu0 0.0
    %55 = vmatpush1.msra.mxu0 %v34
    %56 = vmatprep.subr.mxu0 0.0
    %57 = vmatpush1.msra.mxu0 %v35
    %58 = vmatprep.subr.mxu0 0.0
    %59 = vmatpush1.msra.mxu0 %v36
    %60 = vmatprep.subr.mxu0 0.0
    %61 = vmatpush1.msra.mxu0 %v37
    %62 = vmatprep.subr.mxu0 0.0
    %63 = vmatpush1.msra.mxu0 %v38
    %64 = vmatprep.subr.mxu0 0.0
    %65 = vmatpush1.msra.mxu0 %v39
    %66 = vmatprep.subr.mxu0 0.0
    %67 = vmatpush1.msra.mxu0 %v40
    %68 = vmatprep.subr.mxu0 0.0
    %69 = vmatpush1.msra.mxu0 %v41
    %70 = vmatprep.subr.mxu0 0.0
    %71 = vmatpush1.msra.mxu0 %v42
    %72 = vmatprep.subr.mxu0 0.0
    %73 = vmatpush1.msra.mxu0 %v43
    %74 = vmatprep.subr.mxu0 0.0
    %75 = vmatpush1.msra.mxu0 %v44
    %76 = vmatprep.subr.mxu0 0.0
    %77 = vmatpush1.msra.mxu0 %v45
    %78 = vmatprep.subr.mxu0 0.0
    %79 = vmatpush1.msra.mxu0 0.0
    %80 = vmatprep.subr.mxu0 0.0
    %81 = vmatpush1.msra.mxu0 0.0
    %82 = vmatprep.subr.mxu0 0.0
    %83 = vmatpush1.msra.mxu0 0.0
    %84 = vmatprep.subr.mxu0 0.0
    %85 = vmatpush1.msra.mxu0 0.0
    %86 = vmatprep.subr.mxu0 0.0
    %87 = vmatpush1.msra.mxu0 0.0
    %88 = vmatprep.subr.mxu0 0.0
    %89 = vmatpush1.msra.mxu0 0.0
    %90 = vmatprep.subr.mxu0 0.0
    %91 = vmatpush1.msra.mxu0 0.0
    %92 = vmatprep.subr.mxu0 0.0
    %93 = vmatpush1.msra.mxu0 0.0
    %94 = vmatprep.subr.mxu0 0.0
    %95 = vmatpush1.msra.mxu0 0.0
    %96 = vmatprep.subr.mxu0 0.0
    %97 = vmatpush1.msra.mxu0 0.0
    %98 = vmatprep.subr.mxu0 0.0
    %99 = vmatpush1.msra.mxu0 0.0
    %100 = vmatprep.subr.mxu0 0.0
    %101 = vmatpush1.msra.mxu0 0.0
    %102 = vmatprep.subr.mxu0 0.0
    %103 = vmatpush1.msra.mxu0 0.0
    %104 = vmatprep.subr.mxu0 0.0
    %105 = vmatpush1.msra.mxu0 0.0
    %106 = vmatprep.subr.mxu0 0.0
    %107 = vmatpush1.msra.mxu0 0.0
    %108 = vmatprep.subr.mxu0 0.0
    %109 = vmatpush1.msra.mxu0 0.0
    %110 = vmatprep.mubr.f32.mxu0 0.0
    %111 = vmatmul.mubr.f32.gmra.mrb[0].mxu0 %v29
    %v112 = vpop.f32.mrb[0].mxu0
    %v113 = vadd.f32 0.0, %v112
    %v114 = vpop.f32.mrb[0].mxu0
    %115 = vdwg.mxu0
    %v116 = vrot.slane %v113, 4
    %v117 = vadd.f32 %v113, %v116
    %v118 = vrot.slane %v117, 2
    %v119 = vadd.f32 %v117, %v118
    %v120 = vrot.slane %v119, 1
    %v121 = vadd.f32 %v119, %v120
    %v122 = vrcp.pop 8.0
    %v123 = vmul.f32 %v121, %v122
    %v124 = vmul.f32 %v113, %v113
    %v125 = vrot.slane %v124, 4
    %v126 = vadd.f32 %v124, %v125
    %v127 = vrot.slane %v126, 2
    %v128 = vadd.f32 %v126, %v127
    %v129 = vrot.slane %v128, 1
    %v130 = vadd.f32 %v128, %v129
    %v131 = vmul.f32 %v130, %v122
    %v132 = vmul.f32 %v123, %v123
    %v133 = vsub.f32 %v131, %v132
    %v134 = vmax.f32 %v133, 0.0
    %v135 = vld [vmem:[%s2] sm:$0x1]
    %v136 = vld [vmem:[%s2 + $0x1] sm:$0x1]
    %v137 = vadd.f32 %v134, 1e-05
    %v138 = vrsqrt.pop %v137
    %v139 = vmul.f32 %v135, %v138
    %v140 = vmul.f32 %v123, %v139
    %v141 = vsub.f32 %v136, %v140
    %v142 = vlaneseq
    %v143 = vshrl.u32 %v142, 7
    %v144 = vsub.s32 0, %v143
    %v145 = vrot.slane %v139, %v144
    %v146 = vmul.f32 %v113, %v145
    %v147 = vlaneseq
    %v148 = vshrl.u32 %v147, 7
    %v149 = vsub.s32 0, %v148
    %v150 = vrot.slane %v141, %v149
    %v151 = vadd.f32 %v146, %v150
    %v152 = vmax.f32 %v151, 0.0
    %s153 = scalar_lea.vmem [#allocation2], 128
    %v154 = vld [vmem:[%s153] sm:$0xff]
    %v155 = vld [vmem:[%s153 + $0x8] sm:$0xff]
    %v156 = vld [vmem:[%s153 + $0x10] sm:$0xff]
    %v157 = vld [vmem:[%s153 + $0x18] sm:$0xff]
    %v158 = vld [vmem:[%s153 + $0x20] sm:$0xff]
    %v159 = vld [vmem:[%s153 + $0x28] sm:$0xff]
    %v160 = vld [vmem:[%s153 + $0x30] sm:$0xff]
    %v161 = vld [vmem:[%s153 + $0x38] sm:$0xff]
    %v162 = vld [vmem:[%s153 + $0x40] sm:$0xff]
    %v163 = vld [vmem:[%s153 + $0x48] sm:$0xff]
    %v164 = vld [vmem:[%s153 + $0x50] sm:$0xff]
    %v165 = vld [vmem:[%s153 + $0x58] sm:$0xff]
    %v166 = vld [vmem:[%s153 + $0x60] sm:$0xff]
    %v167 = vld [vmem:[%s153 + $0x68] sm:$0xff]
    %v168 = vld [vmem:[%s153 + $0x70] sm:$0xff]
    %v169 = vld [vmem:[%s153 + $0x78] sm:$0xff]
    %170 = vmatprep.subr.mxu0 0.0
    %171 = vmatpush1.msra.mxu0 %v154
    %172 = vmatprep.subr.mxu0 0.0
    %173 = vmatpush1.msra.mxu0 %v155
    %174 = vmatprep.subr.mxu0 0.0
    %175 = vmatpush1.msra.mxu0 %v156
    %176 = vmatprep.subr.mxu0 0.0
    %177 = vmatpush1.msra.mxu0 %v157
    %178 = vmatprep.subr.mxu0 0.0
    %179 = vmatpush1.msra.mxu0 %v158
    %180 = vmatprep.subr.mxu0 0.0
    %181 = vmatpush1.msra.mxu0 %v159
    %182 = vmatprep.subr.mxu0 0.0
    %183 = vmatpush1.msra.mxu0 %v160
    %184 = vmatprep.subr.mxu0 0.0
    %185 = vmatpush1.msra.mxu0 %v161
    %186 = vmatprep.subr.mxu0 0.0
    %187 = vmatpush1.msra.mxu0 %v162
    %188 = vmatprep.subr.mxu0 0.0
    %189 = vmatpush1.msra.mxu0 %v163
    %190 = vmatprep.subr.mxu0 0.0
    %191 = vmatpush1.msra.mxu0 %v164
    %192 = vmatprep.subr.mxu0 0.0
    %193 = vmatpush1.msra.mxu0 %v165
    %194 = vmatprep.subr.mxu0 0.0
    %195 = vmatpush1.msra.mxu0 %v166
    %196 = vmatprep.subr.mxu0 0.0
    %197 = vmatpush1.msra.mxu0 %v167
    %198 = vmatprep.subr.mxu0 0.0
    %199 = vmatpush1.msra.mxu0 %v168
    %200 = vmatprep.subr.mxu0 0.0
    %201 = vmatpush1.msra.mxu0 %v169
    %202 = vmatprep.subr.mxu0 0.0
    %203 = vmatpush1.msra.mxu0 0.0
    %204 = vmatprep.subr.mxu0 0.0
    %205 = vmatpush1.msra.mxu0 0.0
    %206 = vmatprep.subr.mxu0 0.0
    %207 = vmatpush1.msra.mxu0 0.0
    %208 = vmatprep.subr.mxu0 0.0
    %209 = vmatpush1.msra.mxu0 0.0
    %210 = vmatprep.subr.mxu0 0.0
    %211 = vmatpush1.msra.mxu0 0.0
    %212 = vmatprep.subr.mxu0 0.0
    %213 = vmatpush1.msra.mxu0 0.0
    %214 = vmatprep.subr.mxu0 0.0
    %215 = vmatpush1.msra.mxu0 0.0
    %216 = vmatprep.subr.mxu0 0.0
    %217 = vmatpush1.msra.mxu0 0.0
    %218 = vmatprep.subr.mxu0 0.0
    %219 = vmatpush1.msra.mxu0 0.0
    %220 = vmatprep.subr.mxu0 0.0
    %221 = vmatpush1.msra.mxu0 0.0
    %222 = vmatprep.subr.mxu0 0.0
    %223 = vmatpush1.msra.mxu0 0.0
    %224 = vmatprep.subr.mxu0 0.0
    %225 = vmatpush1.msra.mxu0 0.0
    %226 = vmatprep.subr.mxu0 0.0
    %227 = vmatpush1.msra.mxu0 0.0
    %228 = vmatprep.subr.mxu0 0.0
    %229 = vmatpush1.msra.mxu0 0.0
    %230 = vmatprep.subr.mxu0 0.0
    %231 = vmatpush1.msra.mxu0 0.0
    %232 = vmatprep.subr.mxu0 0.0
    %233 = vmatpush1.msra.mxu0 0.0
    %234 = vmatprep.mubr.f32.mxu0 0.0
    %235 = vmatmul.mubr.f32.gmra.mrb[0].mxu0 %v152
    %v236 = vpop.f32.mrb[0].mxu0
    %v237 = vadd.f32 0.0, %v236
    %v238 = vpop.f32.mrb[0].mxu0
    %239 = vdwg.mxu0
    %v240 = vrot.slane %v237, 4
    %v241 = vadd.f32 %v237, %v240
    %v242 = vrot.slane %v241, 2
    %v243 = vadd.f32 %v241, %v242
    %v244 = vrot.slane %v243, 1
    %v245 = vadd.f32 %v243, %v244
    %v246 = vmul.f32 %v245, %v122
    %v247 = vmul.f32 %v237, %v237
    %v248 = vrot.slane %v247, 4
    %v249 = vadd.f32 %v247, %v248
    %v250 = vrot.slane %v249, 2
    %v251 = vadd.f32 %v249, %v250
    %v252 = vrot.slane %v251, 1
    %v253 = vadd.f32 %v251, %v252
    %v254 = vmul.f32 %v253, %v122
    %v255 = vmul.f32 %v246, %v246
    %v256 = vsub.f32 %v254, %v255
    %v257 = vmax.f32 %v256, 0.0
    %s258 = scalar_lea.vmem %s2, 2
    %v259 = vld [vmem:[%s258] sm:$0x1]
    %v260 = vld [vmem:[%s258 + $0x1] sm:$0x1]
    %v261 = vadd.f32 %v257, 1e-05
    %v262 = vrsqrt.pop %v261
    %v263 = vmul.f32 %v259, %v262
    %v264 = vmul.f32 %v246, %v263
    %v265 = vsub.f32 %v260, %v264
    %v266 = vlaneseq
    %v267 = vshrl.u32 %v266, 7
    %v268 = vsub.s32 0, %v267
    %v269 = vrot.slane %v263, %v268
    %v270 = vmul.f32 %v237, %v269
    %v271 = vlaneseq
    %v272 = vshrl.u32 %v271, 7
    %v273 = vsub.s32 0, %v272
    %v274 = vrot.slane %v265, %v273
    %v275 = vadd.f32 %v270, %v274
    %v276 = vmax.f32 %v275, 0.0
    %s277 = scalar_lea.vmem [#allocation2], 256
    %v278 = vld [vmem:[%s277] sm:$0xff]
    %v279 = vld [vmem:[%s277 + $0x8] sm:$0xff]
    %v280 = vld [vmem:[%s277 + $0x10] sm:$0xff]
    %v281 = vld [vmem:[%s277 + $0x18] sm:$0xff]
    %v282 = vld [vmem:[%s277 + $0x20] sm:$0xff]
    %v283 = vld [vmem:[%s277 + $0x28] sm:$0xff]
    %v284 = vld [vmem:[%s277 + $0x30] sm:$0xff]
    %v285 = vld [vmem:[%s277 + $0x38] sm:$0xff]
    %v286 = vld [vmem:[%s277 + $0x40] sm:$0xff]
    %v287 = vld [vmem:[%s277 + $0x48] sm:$0xff]
    %v288 = vld [vmem:[%s277 + $0x50] sm:$0xff]
    %v289 = vld [vmem:[%s277 + $0x58] sm:$0xff]
    %v290 = vld [vmem:[%s277 + $0x60] sm:$0xff]
    %v291 = vld [vmem:[%s277 + $0x68] sm:$0xff]
    %v292 = vld [vmem:[%s277 + $0x70] sm:$0xff]
    %v293 = vld [vmem:[%s277 + $0x78] sm:$0xff]
    %s294 = scalar_lea.vmem %s2, 4
    %v295 = vld [vmem:[%s294] sm:$0x1]
    %v296 = vlaneseq
    %v297 = vshrl.u32 %v296, 7
    %v298 = vsub.s32 0, %v297
    %v299 = vrot.slane %v295, %v298
    %300 = vmatprep.subr.mxu0 0.0
    %301 = vmatpush1.msra.mxu0 %v278
    %302 = vmatprep.subr.mxu0 0.0
    %303 = vmatpush1.msra.mxu0 %v279
    %304 = vmatprep.subr.mxu0 0.0
    %305 = vmatpush1.msra.mxu0 %v280
    %306 = vmatprep.subr.mxu0 0.0
    %307 = vmatpush1.msra.mxu0 %v281
    %308 = vmatprep.subr.mxu0 0.0
    %309 = vmatpush1.msra.mxu0 %v282
    %310 = vmatprep.subr.mxu0 0.0
    %311 = vmatpush1.msra.mxu0 %v283
    %312 = vmatprep.subr.mxu0 0.0
    %313 = vmatpush1.msra.mxu0 %v284
    %314 = vmatprep.subr.mxu0 0.0
    %315 = vmatpush1.msra.mxu0 %v285
    %316 = vmatprep.subr.mxu0 0.0
    %317 = vmatpush1.msra.mxu0 %v286
    %318 = vmatprep.subr.mxu0 0.0
    %319 = vmatpush1.msra.mxu0 %v287
    %320 = vmatprep.subr.mxu0 0.0
    %321 = vmatpush1.msra.mxu0 %v288
    %322 = vmatprep.subr.mxu0 0.0
    %323 = vmatpush1.msra.mxu0 %v289
    %324 = vmatprep.subr.mxu0 0.0
    %325 = vmatpush1.msra.mxu0 %v290
    %326 = vmatprep.subr.mxu0 0.0
    %327 = vmatpush1.msra.mxu0 %v291
    %328 = vmatprep.subr.mxu0 0.0
    %329 = vmatpush1.msra.mxu0 %v292
    %330 = vmatprep.subr.mxu0 0.0
    %331 = vmatpush1.msra.mxu0 %v293
    %332 = vmatprep.subr.mxu0 0.0
    %333 = vmatpush1.msra.mxu0 0.0
    %334 = vmatprep.subr.mxu0 0.0
    %335 = vmatpush1.msra.mxu0 0.0
    %336 = vmatprep.subr.mxu0 0.0
    %337 = vmatpush1.msra.mxu0 0.0
    %338 = vmatprep.subr.mxu0 0.0
    %339 = vmatpush1.msra.mxu0 0.0
    %340 = vmatprep.subr.mxu0 0.0
    %341 = vmatpush1.msra.mxu0 0.0
    %342 = vmatprep.subr.mxu0 0.0
    %343 = vmatpush1.msra.mxu0 0.0
    %344 = vmatprep.subr.mxu0 0.0
    %345 = vmatpush1.msra.mxu0 0.0
    %346 = vmatprep.subr.mxu0 0.0
    %347 = vmatpush1.msra.mxu0 0.0
    %348 = vmatprep.subr.mxu0 0.0
    %349 = vmatpush1.msra.mxu0 0.0
    %350 = vmatprep.subr.mxu0 0.0
    %351 = vmatpush1.msra.mxu0 0.0
    %352 = vmatprep.subr.mxu0 0.0
    %353 = vmatpush1.msra.mxu0 0.0
    %354 = vmatprep.subr.mxu0 0.0
    %355 = vmatpush1.msra.mxu0 0.0
    %356 = vmatprep.subr.mxu0 0.0
    %357 = vmatpush1.msra.mxu0 0.0
    %358 = vmatprep.subr.mxu0 0.0
    %359 = vmatpush1.msra.mxu0 0.0
    %360 = vmatprep.subr.mxu0 0.0
    %361 = vmatpush1.msra.mxu0 0.0
    %362 = vmatprep.subr.mxu0 0.0
    %363 = vmatpush1.msra.mxu0 0.0
    %364 = vmatprep.mubr.f32.mxu0 0.0
    %365 = vmatmul.mubr.f32.gmra.mrb[0].mxu0 %v276
    %v366 = vpop.f32.mrb[0].mxu0
    %v367 = vadd.f32 %v299, %v366
    %v368 = vpop.f32.mrb[0].mxu0
    %369 = vdwg.mxu0
    %370 = vst [vmem:[#allocation5] sm:$0xff] %v367
    // Predicated region
    $region18: #{linear_network_forward.1} parent=1 // pred_check
      _
    $region19: #{linear_network_forward.1} parent=1 // pred_check_branch
      %372 = sbr.rel (0) target = $region21
    $region20: #{linear_network_forward.1} parent=1 // pred_region
      %s374 = ssub.s32 128, 128
      %375 = vsyncadd [#allocation4], %s374
      %s377 = sshll.u32 [#allocation5], 4
      %s378 = int_to_ptr.vmem [resolvable:$true] %s377
      %380 = dma.vmem_to_hbm [thread:$0]  %s378, 128, %s3, [#allocation4]
    $region21: #{linear_network_forward.1} parent=1 // pred_fallthru
      _
    // Predicated region
    $region22: #{linear_network_forward.1} parent=1 // pred_check
      _
    $region23: #{linear_network_forward.1} parent=1 // pred_check_branch
      %382 = sbr.rel (0) target = $region25
    $region24: #{linear_network_forward.1} parent=1 // pred_region
      %383 = dma.done [#allocation4], 128
    $region25: #{linear_network_forward.1} parent=1 // pred_fallthru
      _
    %384 = vsyncpa [#allocation3], 1
    %385 = vsyncpa [#allocation4], 1

</llo_original>
